<compile_context>
chip_gen: v7x
topology: tpu7x:2x2x1
jax: 0.10.0
libtpu: 0.0.40
codegen_flags: <defaults>
</compile_context>

<pallas_src>
import functools

import numpy as np
import jax
import jax.numpy as jnp
from jax.experimental import pallas as pl
from jax.experimental.pallas import tpu as pltpu


def _pad_amount(k, p=None, d=1):
    # mirrors model/TSN/classification.py::pad
    if d > 1:
        k = d * (k - 1) + 1
    if p is None:
        p = k // 2
    return p


def _round_up(x, m):
    return (x + m - 1) // m * m


def _choose_tile_l(Lv, dk_max, cap=1024):
    # Largest multiple of 128 that divides Lv, is >= dk_max (so the tap halo fits in one
    # neighbour tile) and <= cap.
    # TODO(synk): per-generation cap (v6e can take 2-4x larger tiles; v5e/v7x smaller).
    n = Lv // 128
    divs = sorted(t * 128 for t in range(1, n + 1) if n % t == 0)
    good = [t for t in divs if t >= dk_max]
    if not good:
        return Lv
    capped = [t for t in good if t <= cap]
    return capped[-1] if capped else good[0]


def conv_stats_kernel(xc_ref, xn_ref, w_ref, mask_ref, y_ref, st_ref, *,
                      KH, KW, Wp, TILE_L):
    # xc_ref, xn_ref: (Cin_p, TILE_L) bf16 -- current lane tile and its right neighbour
    #                 (halo; clamped at the last tile, wrapped lanes only feed masked outputs).
    # w_ref:    (KH*KW, Cout_p, Cin_p) bf16 -- one (Cout_p, Cin_p) matrix per tap.
    # mask_ref: (1, TILE_L) f32 -- 1.0 at valid output lanes (h < H and w < W) of this tile.
    # y_ref:    (Cout_p, TILE_L) bf16 -- conv output tile (invalid lanes zeroed).
    # st_ref:   (Cout_p, 128) f32 -- lane 0: sum, lane 1: sum of squares over valid lanes.
    window = jnp.concatenate([xc_ref[...], xn_ref[...]], axis=1)   # (Cin_p, 2*TILE_L) bf16
    acc = jnp.zeros((y_ref.shape[0], TILE_L), jnp.float32)
    for kh in range(KH):
        for kw in range(KW):
            dk = kh * Wp + kw                              # static lane offset of this tap
            xs = window[:, dk:dk + TILE_L]                 # (Cin_p, TILE_L), static slice
            acc += jnp.dot(w_ref[kh * KW + kw], xs,        # bf16 x bf16 -> f32 accumulate
                           preferred_element_type=jnp.float32)
    acc *= mask_ref[...]                                   # zero invalid (padding) lanes
    y_ref[...] = acc.astype(y_ref.dtype)

    s = jnp.sum(acc, axis=1, keepdims=True)                # (Cout_p, 1)
    sq = jnp.sum(acc * acc, axis=1, keepdims=True)         # (Cout_p, 1)
    lane = jax.lax.broadcasted_iota(jnp.int32, st_ref.shape, 1)
    st_ref[...] = jnp.where(lane == 0, s, jnp.where(lane == 1, sq, 0.0))


def bn_silu_kernel(y_ref, ss_ref, o_ref):
    # y_ref:  (Cout_p, TILE_L) bf16 conv output tile
    # ss_ref: (Cout_p, 2) f32 folded BN affine: [:,0] = scale, [:,1] = shift
    # o_ref:  (Cout_p, TILE_L) bf16 (aliased with y's buffer)
    y = y_ref[...].astype(jnp.float32)                     # keep epilogue math f32 (v5e EUP)
    z = y * ss_ref[:, 0:1] + ss_ref[:, 1:2]                # single FMA
    o_ref[...] = (z * jax.nn.sigmoid(z)).astype(o_ref.dtype)


def conv_bn_silu(x_nchw, weight_oihw, gamma, beta, *,
                 k=3, s=1, p=None, d=1, g=1, eps=1e-3, tile_l=None):
    assert s == 1 and d == 1 and g == 1, "only the s=1, d=1, g=1 path is wired up"
    N, Cin, H, W = x_nchw.shape
    Cout, _, KH, KW = weight_oihw.shape
    assert KH == k and KW == k
    pd = _pad_amount(KH, p, d)
    Hp, Wp = H + 2 * pd, W + 2 * pd

    f32, bf16 = jnp.float32, jnp.bfloat16
    Cin_p = _round_up(Cin, 8)
    Cout_p = _round_up(Cout, 8)
    Lv = _round_up(Hp * Wp, 128)                # lane-dense padded frame (covers all tap reads)
    dk_max = (KH - 1) * Wp + (KW - 1)           # largest tap lane offset (halo width)

    if tile_l is None:
        tile_l = _choose_tile_l(Lv, dk_max)
    assert tile_l % 128 == 0 and Lv % tile_l == 0 and tile_l >= dk_max
    n_lt = Lv // tile_l

    # ---- input prep: one fused pad(+cast)+slice pass -> (N, Cin_p, Lv) bf16 ------------
    extra_h = -(-(Lv - Hp * Wp) // Wp)          # extra zero rows so the flat frame covers Lv
    x_pad = jnp.pad(x_nchw.astype(bf16),
                    ((0, 0), (0, Cin_p - Cin), (pd, pd + extra_h), (pd, pd)))
    x_flat = x_pad.reshape(N, Cin_p, (Hp + extra_h) * Wp)[:, :, :Lv]

    # weights: OIHW -> (KH*KW, Cout_p, Cin_p) bf16, taps on the leading axis
    w_pad = jnp.pad(weight_oihw.astype(bf16),
                    ((0, Cout_p - Cout), (0, Cin_p - Cin), (0, 0), (0, 0)))
    w_taps = jnp.transpose(w_pad, (2, 3, 0, 1)).reshape(KH * KW, Cout_p, Cin_p)

    # validity mask of the padded output frame
    q = np.arange(Lv)
    mask = jnp.asarray((((q // Wp) < H) & ((q % Wp) < W)).reshape(1, Lv), f32)

    cparams = pltpu.CompilerParams(
        dimension_semantics=("parallel", "parallel"),   # both TCs on v7x; no-op on v5e/v6e
        vmem_limit_bytes=32 * 1024 * 1024)

    # ---- pass 1: conv (bf16 MXU, f32 acc) + per-tile BN moments ------------------------
    kern_a = functools.partial(conv_stats_kernel, KH=KH, KW=KW, Wp=Wp, TILE_L=tile_l)
    last = n_lt - 1
    y_flat, stats = pl.pallas_call(
        kern_a,
        grid=(N, n_lt),
        in_specs=[
            pl.BlockSpec((None, Cin_p, tile_l), lambda n, l: (n, 0, l)),
            pl.BlockSpec((None, Cin_p, tile_l),
                         lambda n, l: (n, 0, jnp.minimum(l + 1, last))),
            pl.BlockSpec((KH * KW, Cout_p, Cin_p), lambda n, l: (0, 0, 0)),
            pl.BlockSpec((1, tile_l), lambda n, l: (0, l)),
        ],
        out_specs=[
            pl.BlockSpec((None, Cout_p, tile_l), lambda n, l: (n, 0, l)),
            pl.BlockSpec((None, Cout_p, 128), lambda n, l: (n * n_lt + l, 0, 0)),
        ],
        out_shape=[
            jax.ShapeDtypeStruct((N, Cout_p, Lv), bf16),
            jax.ShapeDtypeStruct((N * n_lt, Cout_p, 128), f32),
        ],
        compiler_params=cparams,
    )(x_flat, x_flat, w_taps, mask)

    # ---- fold training-mode BN batch stats (biased variance) into scale/shift ----------
    count = float(N * H * W)
    tot = jnp.sum(stats, axis=0)                           # (Cout_p, 128), tiny
    mean = tot[:, 0] / count
    var = jnp.maximum(tot[:, 1] / count - mean * mean, 0.0)   # guard cancellation
    # TODO(synk): Welford / two-pass moments for very large N*H*W.
    gamma_p = jnp.pad(gamma.astype(f32), (0, Cout_p - Cout))
    beta_p = jnp.pad(beta.astype(f32), (0, Cout_p - Cout))
    scale = gamma_p * jax.lax.rsqrt(var + eps)
    shift = beta_p - mean * scale
    ss = jnp.stack([scale, shift], axis=1)                 # (Cout_p, 2)

    # ---- pass 2: folded-BN FMA + SiLU, in place over y (HBM-bound) ---------------------
    z_flat = pl.pallas_call(
        bn_silu_kernel,
        grid=(N, n_lt),
        in_specs=[
            pl.BlockSpec((None, Cout_p, tile_l), lambda n, l: (n, 0, l)),
            pl.BlockSpec((Cout_p, 2), lambda n, l: (0, 0)),
        ],
        out_specs=pl.BlockSpec((None, Cout_p, tile_l), lambda n, l: (n, 0, l)),
        out_shape=jax.ShapeDtypeStruct((N, Cout_p, Lv), bf16),
        input_output_aliases={0: 0},
        compiler_params=cparams,
    )(y_flat, ss)

    # ---- NCHW extraction: slice + reshape only, no transpose ---------------------------
    # TODO(synk): when chaining Conv blocks, keep the (Cout_p, Lv) lane-dense layout
    #             between layers and skip this crop pass entirely.
    out = z_flat[:, :Cout, :H * Wp].reshape(N, Cout, H, Wp)[:, :, :, :W]
    return out.astype(x_nchw.dtype)


def _reference(x_nchw, weight_oihw, gamma, beta, *, pad=1, eps=1e-3):
    y = jax.lax.conv_general_dilated(
        x_nchw, weight_oihw, window_strides=(1, 1),
        padding=[(pad, pad), (pad, pad)],
        dimension_numbers=("NCHW", "OIHW", "NCHW"))
    mean = y.mean(axis=(0, 2, 3), keepdims=True)
    var = ((y - mean) ** 2).mean(axis=(0, 2, 3), keepdims=True)
    yn = (y - mean) * jax.lax.rsqrt(var + eps) \
        * gamma.reshape(1, -1, 1, 1) + beta.reshape(1, -1, 1, 1)
    return yn * jax.nn.sigmoid(yn)


if __name__ == "__main__":
    # Small shapes consistent with the module: Conv(in_ch=4, out_ch=8, k=3)
    N, Cin, H, W = 2, 4, 16, 16
    Cout, K = 8, 3

    key = jax.random.PRNGKey(0)
    kx, kw, kg, kb = jax.random.split(key, 4)
    x = jax.random.normal(kx, (N, Cin, H, W), jnp.float32)
    weight = jax.random.normal(kw, (Cout, Cin, K, K), jnp.float32) * 0.1
    gamma = 1.0 + 0.1 * jax.random.normal(kg, (Cout,), jnp.float32)
    beta = 0.1 * jax.random.normal(kb, (Cout,), jnp.float32)

    ref = _reference(x, weight, gamma, beta, pad=_pad_amount(K), eps=1e-3)

    # tile_l=128 exercises the multi-tile halo path; tile_l=None the single-tile path.
    for tl in (128, None):
        run = jax.jit(functools.partial(conv_bn_silu, k=K, eps=1e-3, tile_l=tl))
        out = jax.block_until_ready(run(x, weight, gamma, beta))
        assert out.shape == (N, Cout, H, W)
        err = float(jnp.max(jnp.abs(out - ref)))
        # bf16 MXU operands + bf16 intermediates -> relaxed tolerance vs the f32 reference
        assert jnp.allclose(out, ref, atol=4e-2, rtol=4e-2), (tl, err)

    print("KERNEL_OK")
</pallas_src>

<mosaic_0001>
module attributes {stable_mosaic.version = 11 : i64} {
  func.func @conv_stats_kernel(%arg0: i32, %arg1: i32, %arg2: memref<1x8x128xbf16, #tpu.memory_space<vmem>>, %arg3: memref<1x8x128xbf16, #tpu.memory_space<vmem>>, %arg4: memref<9x8x8xbf16, #tpu.memory_space<vmem>>, %arg5: memref<1x128xf32, #tpu.memory_space<vmem>>, %arg6: memref<1x8x128xbf16, #tpu.memory_space<vmem>>, %arg7: memref<1x8x128xf32, #tpu.memory_space<vmem>>) attributes {dimension_semantics = [#tpu.dimension_semantics<parallel>, #tpu.dimension_semantics<parallel>], iteration_bounds = array<i64: 2, 3>, scalar_prefetch = 0 : i64, scratch_operands = 0 : i64, tpu.core_type = #tpu.core_type<tc>, window_params = [{transform_indices = @transform_0, window_bounds = array<i64: 1, 8, 128>}, {transform_indices = @transform_1, window_bounds = array<i64: 1, 8, 128>}, {pipeline_mode = #tpu.pipeline_mode<synchronous>, transform_indices = @transform_2, window_bounds = array<i64: 9, 8, 8>}, {transform_indices = @transform_3, window_bounds = array<i64: 1, 128>}, {transform_indices = @transform_4, window_bounds = array<i64: 1, 8, 128>}, {transform_indices = @transform_5, window_bounds = array<i64: 1, 8, 128>}]} {
    %c0 = arith.constant 0 : index
    %c0_0 = arith.constant 0 : index
    %c0_1 = arith.constant 0 : index
    %0 = vector.load %arg2[%c0, %c0_0, %c0_1] : memref<1x8x128xbf16, #tpu.memory_space<vmem>>, vector<1x8x128xbf16>
    %1 = vector.shape_cast %0 : vector<1x8x128xbf16> to vector<8x128xbf16>
    %c0_2 = arith.constant 0 : index
    %c0_3 = arith.constant 0 : index
    %c0_4 = arith.constant 0 : index
    %2 = vector.load %arg3[%c0_2, %c0_3, %c0_4] : memref<1x8x128xbf16, #tpu.memory_space<vmem>>, vector<1x8x128xbf16>
    %3 = vector.shape_cast %2 : vector<1x8x128xbf16> to vector<8x128xbf16>
    %4 = tpu.concatenate %1, %3 in 1 : vector<8x128xbf16>, vector<8x128xbf16> -> vector<8x256xbf16>
    %cst = arith.constant 0.000000e+00 : f32
    %5 = vector.broadcast %cst : f32 to vector<8x128xf32>
    %6 = vector.extract_strided_slice %4 {offsets = [0, 0], sizes = [8, 128], strides = [1, 1]} : vector<8x256xbf16> to vector<8x128xbf16>
    %c0_5 = arith.constant 0 : index
    %c0_6 = arith.constant 0 : index
    %c0_7 = arith.constant 0 : index
    %7 = vector.load %arg4[%c0_5, %c0_6, %c0_7] : memref<9x8x8xbf16, #tpu.memory_space<vmem>>, vector<1x8x8xbf16>
    %8 = vector.shape_cast %7 : vector<1x8x8xbf16> to vector<8x8xbf16>
    %cst_8 = arith.constant dense<0.000000e+00> : vector<8x128xf32>
    %9 = tpu.matmul %8, %6, %cst_8 {dimension_numbers = #tpu.dot_dimension_numbers<[1], [0], [0], [1], [0, 0, 1, 1], [], []>} : vector<8x8xbf16>, vector<8x128xbf16>, vector<8x128xf32> -> vector<8x128xf32>
    %10 = arith.addf %5, %9 : vector<8x128xf32>
    %11 = vector.extract_strided_slice %4 {offsets = [0, 1], sizes = [8, 128], strides = [1, 1]} : vector<8x256xbf16> to vector<8x128xbf16>
    %c1 = arith.constant 1 : index
    %c0_9 = arith.constant 0 : index
    %c0_10 = arith.constant 0 : index
    %12 = vector.load %arg4[%c1, %c0_9, %c0_10] : memref<9x8x8xbf16, #tpu.memory_space<vmem>>, vector<1x8x8xbf16>
    %13 = vector.shape_cast %12 : vector<1x8x8xbf16> to vector<8x8xbf16>
    %cst_11 = arith.constant dense<0.000000e+00> : vector<8x128xf32>
    %14 = tpu.matmul %13, %11, %cst_11 {dimension_numbers = #tpu.dot_dimension_numbers<[1], [0], [0], [1], [0, 0, 1, 1], [], []>} : vector<8x8xbf16>, vector<8x128xbf16>, vector<8x128xf32> -> vector<8x128xf32>
    %15 = arith.addf %10, %14 : vector<8x128xf32>
    %16 = vector.extract_strided_slice %4 {offsets = [0, 2], sizes = [8, 128], strides = [1, 1]} : vector<8x256xbf16> to vector<8x128xbf16>
    %c2 = arith.constant 2 : index
    %c0_12 = arith.constant 0 : index
    %c0_13 = arith.constant 0 : index
    %17 = vector.load %arg4[%c2, %c0_12, %c0_13] : memref<9x8x8xbf16, #tpu.memory_space<vmem>>, vector<1x8x8xbf16>
    %18 = vector.shape_cast %17 : vector<1x8x8xbf16> to vector<8x8xbf16>
    %cst_14 = arith.constant dense<0.000000e+00> : vector<8x128xf32>
    %19 = tpu.matmul %18, %16, %cst_14 {dimension_numbers = #tpu.dot_dimension_numbers<[1], [0], [0], [1], [0, 0, 1, 1], [], []>} : vector<8x8xbf16>, vector<8x128xbf16>, vector<8x128xf32> -> vector<8x128xf32>
    %20 = arith.addf %15, %19 : vector<8x128xf32>
    %21 = vector.extract_strided_slice %4 {offsets = [0, 18], sizes = [8, 128], strides = [1, 1]} : vector<8x256xbf16> to vector<8x128xbf16>
    %c3 = arith.constant 3 : index
    %c0_15 = arith.constant 0 : index
    %c0_16 = arith.constant 0 : index
    %22 = vector.load %arg4[%c3, %c0_15, %c0_16] : memref<9x8x8xbf16, #tpu.memory_space<vmem>>, vector<1x8x8xbf16>
    %23 = vector.shape_cast %22 : vector<1x8x8xbf16> to vector<8x8xbf16>
    %cst_17 = arith.constant dense<0.000000e+00> : vector<8x128xf32>
    %24 = tpu.matmul %23, %21, %cst_17 {dimension_numbers = #tpu.dot_dimension_numbers<[1], [0], [0], [1], [0, 0, 1, 1], [], []>} : vector<8x8xbf16>, vector<8x128xbf16>, vector<8x128xf32> -> vector<8x128xf32>
    %25 = arith.addf %20, %24 : vector<8x128xf32>
    %26 = vector.extract_strided_slice %4 {offsets = [0, 19], sizes = [8, 128], strides = [1, 1]} : vector<8x256xbf16> to vector<8x128xbf16>
    %c4 = arith.constant 4 : index
    %c0_18 = arith.constant 0 : index
    %c0_19 = arith.constant 0 : index
    %27 = vector.load %arg4[%c4, %c0_18, %c0_19] : memref<9x8x8xbf16, #tpu.memory_space<vmem>>, vector<1x8x8xbf16>
    %28 = vector.shape_cast %27 : vector<1x8x8xbf16> to vector<8x8xbf16>
    %cst_20 = arith.constant dense<0.000000e+00> : vector<8x128xf32>
    %29 = tpu.matmul %28, %26, %cst_20 {dimension_numbers = #tpu.dot_dimension_numbers<[1], [0], [0], [1], [0, 0, 1, 1], [], []>} : vector<8x8xbf16>, vector<8x128xbf16>, vector<8x128xf32> -> vector<8x128xf32>
    %30 = arith.addf %25, %29 : vector<8x128xf32>
    %31 = vector.extract_strided_slice %4 {offsets = [0, 20], sizes = [8, 128], strides = [1, 1]} : vector<8x256xbf16> to vector<8x128xbf16>
    %c5 = arith.constant 5 : index
    %c0_21 = arith.constant 0 : index
    %c0_22 = arith.constant 0 : index
    %32 = vector.load %arg4[%c5, %c0_21, %c0_22] : memref<9x8x8xbf16, #tpu.memory_space<vmem>>, vector<1x8x8xbf16>
    %33 = vector.shape_cast %32 : vector<1x8x8xbf16> to vector<8x8xbf16>
    %cst_23 = arith.constant dense<0.000000e+00> : vector<8x128xf32>
    %34 = tpu.matmul %33, %31, %cst_23 {dimension_numbers = #tpu.dot_dimension_numbers<[1], [0], [0], [1], [0, 0, 1, 1], [], []>} : vector<8x8xbf16>, vector<8x128xbf16>, vector<8x128xf32> -> vector<8x128xf32>
    %35 = arith.addf %30, %34 : vector<8x128xf32>
    %36 = vector.extract_strided_slice %4 {offsets = [0, 36], sizes = [8, 128], strides = [1, 1]} : vector<8x256xbf16> to vector<8x128xbf16>
    %c6 = arith.constant 6 : index
    %c0_24 = arith.constant 0 : index
    %c0_25 = arith.constant 0 : index
    %37 = vector.load %arg4[%c6, %c0_24, %c0_25] : memref<9x8x8xbf16, #tpu.memory_space<vmem>>, vector<1x8x8xbf16>
    %38 = vector.shape_cast %37 : vector<1x8x8xbf16> to vector<8x8xbf16>
    %cst_26 = arith.constant dense<0.000000e+00> : vector<8x128xf32>
    %39 = tpu.matmul %38, %36, %cst_26 {dimension_numbers = #tpu.dot_dimension_numbers<[1], [0], [0], [1], [0, 0, 1, 1], [], []>} : vector<8x8xbf16>, vector<8x128xbf16>, vector<8x128xf32> -> vector<8x128xf32>
    %40 = arith.addf %35, %39 : vector<8x128xf32>
    %41 = vector.extract_strided_slice %4 {offsets = [0, 37], sizes = [8, 128], strides = [1, 1]} : vector<8x256xbf16> to vector<8x128xbf16>
    %c7 = arith.constant 7 : index
    %c0_27 = arith.constant 0 : index
    %c0_28 = arith.constant 0 : index
    %42 = vector.load %arg4[%c7, %c0_27, %c0_28] : memref<9x8x8xbf16, #tpu.memory_space<vmem>>, vector<1x8x8xbf16>
    %43 = vector.shape_cast %42 : vector<1x8x8xbf16> to vector<8x8xbf16>
    %cst_29 = arith.constant dense<0.000000e+00> : vector<8x128xf32>
    %44 = tpu.matmul %43, %41, %cst_29 {dimension_numbers = #tpu.dot_dimension_numbers<[1], [0], [0], [1], [0, 0, 1, 1], [], []>} : vector<8x8xbf16>, vector<8x128xbf16>, vector<8x128xf32> -> vector<8x128xf32>
    %45 = arith.addf %40, %44 : vector<8x128xf32>
    %46 = vector.extract_strided_slice %4 {offsets = [0, 38], sizes = [8, 128], strides = [1, 1]} : vector<8x256xbf16> to vector<8x128xbf16>
    %c8 = arith.constant 8 : index
    %c0_30 = arith.constant 0 : index
    %c0_31 = arith.constant 0 : index
    %47 = vector.load %arg4[%c8, %c0_30, %c0_31] : memref<9x8x8xbf16, #tpu.memory_space<vmem>>, vector<1x8x8xbf16>
    %48 = vector.shape_cast %47 : vector<1x8x8xbf16> to vector<8x8xbf16>
    %cst_32 = arith.constant dense<0.000000e+00> : vector<8x128xf32>
    %49 = tpu.matmul %48, %46, %cst_32 {dimension_numbers = #tpu.dot_dimension_numbers<[1], [0], [0], [1], [0, 0, 1, 1], [], []>} : vector<8x8xbf16>, vector<8x128xbf16>, vector<8x128xf32> -> vector<8x128xf32>
    %50 = arith.addf %45, %49 : vector<8x128xf32>
    %c0_33 = arith.constant 0 : index
    %c0_34 = arith.constant 0 : index
    %51 = vector.load %arg5[%c0_33, %c0_34] : memref<1x128xf32, #tpu.memory_space<vmem>>, vector<1x128xf32>
    %52 = vector.broadcast %51 : vector<1x128xf32> to vector<8x128xf32>
    %53 = arith.mulf %50, %52 : vector<8x128xf32>
    %54 = arith.truncf %53 : vector<8x128xf32> to vector<8x128xbf16>
    %c0_35 = arith.constant 0 : index
    %c0_36 = arith.constant 0 : index
    %c0_37 = arith.constant 0 : index
    %55 = vector.load %arg6[%c0_35, %c0_36, %c0_37] : memref<1x8x128xbf16, #tpu.memory_space<vmem>>, vector<1x8x128xbf16>
    %56 = vector.shape_cast %55 : vector<1x8x128xbf16> to vector<8x128xbf16>
    %57 = vector.shape_cast %54 : vector<8x128xbf16> to vector<1x8x128xbf16>
    tpu.vector_store %arg6[%c0_35, %c0_36, %c0_37], %57 {strides = array<i32>} : memref<1x8x128xbf16, #tpu.memory_space<vmem>>, vector<1x8x128xbf16>,
    %cst_38 = arith.constant dense<0.000000e+00> : vector<8xf32>
    %58 = vector.multi_reduction <add>, %53, %cst_38 [1] : vector<8x128xf32> to vector<8xf32>
    %59 = vector.shape_cast %58 : vector<8xf32> to vector<8x1xf32>
    %60 = arith.mulf %53, %53 : vector<8x128xf32>
    %cst_39 = arith.constant dense<0.000000e+00> : vector<8xf32>
    %61 = vector.multi_reduction <add>, %60, %cst_39 [1] : vector<8x128xf32> to vector<8xf32>
    %62 = vector.shape_cast %61 : vector<8xf32> to vector<8x1xf32>
    %63 = tpu.iota {dimensions = array<i32: 1>} : vector<8x128xi32>
    %c0_i32 = arith.constant 0 : i32
    %64 = vector.broadcast %c0_i32 : i32 to vector<8x128xi32>
    %65 = arith.cmpi eq, %63, %64 : vector<8x128xi32>
    %c1_i32 = arith.constant 1 : i32
    %66 = vector.broadcast %c1_i32 : i32 to vector<8x128xi32>
    %67 = arith.cmpi eq, %63, %66 : vector<8x128xi32>
    %cst_40 = arith.constant 0.000000e+00 : f32
    %68 = vector.shape_cast %62 : vector<8x1xf32> to vector<8x1xf32>
    %69 = vector.broadcast %68 : vector<8x1xf32> to vector<8x128xf32>
    %70 = vector.broadcast %cst_40 : f32 to vector<8x128xf32>
    %71 = arith.select %67, %69, %70 : vector<8x128xi1>, vector<8x128xf32>
    %72 = vector.shape_cast %59 : vector<8x1xf32> to vector<8x1xf32>
    %73 = vector.broadcast %72 : vector<8x1xf32> to vector<8x128xf32>
    %74 = arith.select %65, %73, %71 : vector<8x128xi1>, vector<8x128xf32>
    %c0_41 = arith.constant 0 : index
    %c0_42 = arith.constant 0 : index
    %c0_43 = arith.constant 0 : index
    %75 = vector.load %arg7[%c0_41, %c0_42, %c0_43] : memref<1x8x128xf32, #tpu.memory_space<vmem>>, vector<1x8x128xf32>
    %76 = vector.shape_cast %75 : vector<1x8x128xf32> to vector<8x128xf32>
    %77 = vector.shape_cast %74 : vector<8x128xf32> to vector<1x8x128xf32>
    tpu.vector_store %arg7[%c0_41, %c0_42, %c0_43], %77 {strides = array<i32>} : memref<1x8x128xf32, #tpu.memory_space<vmem>>, vector<1x8x128xf32>,
    return
  }
  func.func @transform_0(%arg0: i32, %arg1: i32) -> (i32, i32, i32) {
    %c0_i32 = arith.constant 0 : i32
    %c0_i32_0 = arith.constant 0 : i32
    return %arg0, %c0_i32, %arg1 : i32, i32, i32
  }
  func.func @transform_1(%arg0: i32, %arg1: i32) -> (i32, i32, i32) {
    %c1_i32 = arith.constant 1 : i32
    %0 = arith.addi %arg1, %c1_i32 : i32
    %c2_i32 = arith.constant 2 : i32
    %1 = arith.minsi %0, %c2_i32 : i32
    %c0_i32 = arith.constant 0 : i32
    %c0_i32_0 = arith.constant 0 : i32
    return %arg0, %c0_i32, %1 : i32, i32, i32
  }
  func.func @transform_2(%arg0: i32, %arg1: i32) -> (i32, i32, i32) {
    %c0_i32 = arith.constant 0 : i32
    %c0_i32_0 = arith.constant 0 : i32
    %c0_i32_1 = arith.constant 0 : i32
    %c0_i32_2 = arith.constant 0 : i32
    return %c0_i32, %c0_i32_0, %c0_i32_1 : i32, i32, i32
  }
  func.func @transform_3(%arg0: i32, %arg1: i32) -> (i32, i32) {
    %c0_i32 = arith.constant 0 : i32
    %c0_i32_0 = arith.constant 0 : i32
    return %c0_i32, %arg1 : i32, i32
  }
  func.func @transform_4(%arg0: i32, %arg1: i32) -> (i32, i32, i32) {
    %c0_i32 = arith.constant 0 : i32
    %c0_i32_0 = arith.constant 0 : i32
    return %arg0, %c0_i32, %arg1 : i32, i32, i32
  }
  func.func @transform_5(%arg0: i32, %arg1: i32) -> (i32, i32, i32) {
    %c3_i32 = arith.constant 3 : i32
    %0 = arith.muli %arg0, %c3_i32 : i32
    %1 = arith.addi %0, %arg1 : i32
    %c0_i32 = arith.constant 0 : i32
    %c0_i32_0 = arith.constant 0 : i32
    %c0_i32_1 = arith.constant 0 : i32
    return %1, %c0_i32, %c0_i32_0 : i32, i32, i32
  }
}

module attributes {stable_mosaic.version = 11 : i64} {
  func.func @bn_silu_kernel(%arg0: i32, %arg1: i32, %arg2: memref<1x8x128xbf16, #tpu.memory_space<vmem>>, %arg3: memref<8x2xf32, #tpu.memory_space<vmem>>, %arg4: memref<1x8x128xbf16, #tpu.memory_space<vmem>>) attributes {dimension_semantics = [#tpu.dimension_semantics<parallel>, #tpu.dimension_semantics<parallel>], iteration_bounds = array<i64: 2, 3>, scalar_prefetch = 0 : i64, scratch_operands = 0 : i64, tpu.core_type = #tpu.core_type<tc>, window_params = [{transform_indices = @transform_0, window_bounds = array<i64: 1, 8, 128>}, {pipeline_mode = #tpu.pipeline_mode<synchronous>, transform_indices = @transform_1, window_bounds = array<i64: 8, 2>}, {transform_indices = @transform_2, window_bounds = array<i64: 1, 8, 128>}]} {
    %c0 = arith.constant 0 : index
    %c0_0 = arith.constant 0 : index
    %c0_1 = arith.constant 0 : index
    %0 = vector.load %arg2[%c0, %c0_0, %c0_1] : memref<1x8x128xbf16, #tpu.memory_space<vmem>>, vector<1x8x128xbf16>
    %1 = vector.shape_cast %0 : vector<1x8x128xbf16> to vector<8x128xbf16>
    %2 = arith.extf %1 : vector<8x128xbf16> to vector<8x128xf32>
    %c0_2 = arith.constant 0 : index
    %c0_3 = arith.constant 0 : index
    %3 = vector.load %arg3[%c0_2, %c0_3] : memref<8x2xf32, #tpu.memory_space<vmem>>, vector<8x1xf32>
    %4 = vector.broadcast %3 : vector<8x1xf32> to vector<8x128xf32>
    %5 = arith.mulf %2, %4 : vector<8x128xf32>
    %c0_4 = arith.constant 0 : index
    %c1 = arith.constant 1 : index
    %6 = vector.load %arg3[%c0_4, %c1] : memref<8x2xf32, #tpu.memory_space<vmem>>, vector<8x1xf32>
    %7 = vector.broadcast %6 : vector<8x1xf32> to vector<8x128xf32>
    %8 = arith.addf %5, %7 : vector<8x128xf32>
    %9 = arith.negf %8 : vector<8x128xf32>
    %10 = math.exp %9 : vector<8x128xf32>
    %cst = arith.constant 1.000000e+00 : f32
    %11 = vector.broadcast %cst : f32 to vector<8x128xf32>
    %12 = arith.addf %11, %10 : vector<8x128xf32>
    %13 = arith.divf %11, %12 : vector<8x128xf32>
    %14 = arith.mulf %8, %13 : vector<8x128xf32>
    %15 = arith.truncf %14 : vector<8x128xf32> to vector<8x128xbf16>
    %c0_5 = arith.constant 0 : index
    %c0_6 = arith.constant 0 : index
    %c0_7 = arith.constant 0 : index
    %16 = vector.load %arg4[%c0_5, %c0_6, %c0_7] : memref<1x8x128xbf16, #tpu.memory_space<vmem>>, vector<1x8x128xbf16>
    %17 = vector.shape_cast %16 : vector<1x8x128xbf16> to vector<8x128xbf16>
    %18 = vector.shape_cast %15 : vector<8x128xbf16> to vector<1x8x128xbf16>
    tpu.vector_store %arg4[%c0_5, %c0_6, %c0_7], %18 {strides = array<i32>} : memref<1x8x128xbf16, #tpu.memory_space<vmem>>, vector<1x8x128xbf16>,
    return
  }
  func.func @transform_0(%arg0: i32, %arg1: i32) -> (i32, i32, i32) {
    %c0_i32 = arith.constant 0 : i32
    %c0_i32_0 = arith.constant 0 : i32
    return %arg0, %c0_i32, %arg1 : i32, i32, i32
  }
  func.func @transform_1(%arg0: i32, %arg1: i32) -> (i32, i32) {
    %c0_i32 = arith.constant 0 : i32
    %c0_i32_0 = arith.constant 0 : i32
    %c0_i32_1 = arith.constant 0 : i32
    return %c0_i32, %c0_i32_0 : i32, i32
  }
  func.func @transform_2(%arg0: i32, %arg1: i32) -> (i32, i32, i32) {
    %c0_i32 = arith.constant 0 : i32
    %c0_i32_0 = arith.constant 0 : i32
    return %arg0, %c0_i32, %arg1 : i32, i32, i32
  }
}

</mosaic_0001>

<llo_original>
// kernel: conv_bn_silu.3
$region0: #{conv_bn_silu.3}
  #allocation0 [shape = 'u32[]', space=smem, size = 0x4, offset = 0x4, fixed_abs, tag = 'smem constant byte address 0x4 - core index']
  #allocation1 [shape = 'u32[144,128]{1,0:T(1,128)}', space=vmem, size = 0x12000, scoped, tag = 'internal scratch']
  %s0 = inlined_call_operand.vmem [shape: bf16[2,8,384], index: 0, kind: input, shape index: {}, may-alias: {0,2}]
  %s1 = inlined_call_operand.vmem [shape: f32[8,2], index: 1, kind: input, shape index: {}]
  %s2 = inlined_call_operand.vmem [shape: bf16[2,8,384], index: 2, kind: output, shape index: {}, may-alias: {0,2}]
  %s3 = sld [smem:[#allocation0]]
  $region41: #{conv_bn_silu.3} parent=0
    _
  %s5 = ssub.s32 1, %s3
  %s6 = scalar_select 0, %s5, %s3
  loop: start=0, step=1, limit=8
  $region2: #{conv_bn_silu.3} parent=0 // loop_pre_header
    _
  $region3: #{conv_bn_silu.3} parent=0 // loop_header
    %s8 = sphi 0, %s12
    %p9 = scmp.ge.s32.totalorder %s8, 8
    %s15 = sphi 0, %s27
    %s16 = sphi 0, %s23
    %s17 = sphi 0, %s15
    %s18 = sphi 0, %s16
    %s19 = sphi 0, %s17
    %s20 = sphi 0, %s18
    %s32 = sphi 0, %s34
    %s35 = sphi 0, %s32
    %s36 = sphi 0, %s35
    %s52 = sphi 0, %s36
    %s56 = sphi 0, %s56
    %s58 = sphi 0, %s56
    %s59 = sphi 0, %s58
    %s73 = sphi 0, %s59
    %s81 = sphi 0, %s83
    %s84 = sphi 0, %s81
    %s85 = sphi 0, %s84
    %s101 = sphi 0, %s85
  $region4: #{conv_bn_silu.3} parent=0 // loop_header_branch
    %11 = sbr.rel (%p9) target = $region8
  $region5: #{conv_bn_silu.3} parent=0 // loop_body
    %s13 = ssub.s32 %s8, 1
    %s14 = ssub.s32 %s8, 2
    %s21 = sadd.s32 1, %s16
    %p22 = scmp.ge.s32.totalorder %s21, 3
    %s23 = scalar_select %p22, 0, %s21
    %s24 = sadd.s32 1, %s15
    %s25 = scalar_select %p22, %s24, %s15
    %p26 = scmp.ge.s32.totalorder %s25, 2
    %s27 = scalar_select %p26, 0, %s25
    %s28 = ssub.s32 %s15, %s27
    %s29 = ssub.s32 %s16, %s23
    %s30 = sor.u32 %s28, %s29
    %p31 = scmp.eq.s32.totalorder %s30, 0
    %s33 = sadd.s32 %s32, 1
    %s34 = scalar_select %p31, %s32, %s33
    %p37 = pneg %p31
    %p38 = scmp.eq.s32.totalorder %s8, 5
    %p39 = por %p37, %p38
    %p40 = scmp.ne.s32.totalorder %s32, %s35
    %p41 = scmp.eq.s32.totalorder %s8, 0
    %p42 = por %p40, %p41
    %p43 = scmp.ne.s32.totalorder %s32, %s35
    %p44 = scmp.eq.s32.totalorder %s13, 5
    %p45 = por %p43, %p44
    %p46 = scmp.ne.s32.totalorder %s35, %s36
    %p47 = scmp.eq.s32.totalorder %s13, 0
    %p48 = por %p46, %p47
    %p49 = scmp.ne.s32.totalorder %s35, %s36
    %p50 = scmp.eq.s32.totalorder %s14, 5
    %p51 = por %p49, %p50
    %p53 = scmp.ne.s32.totalorder %s36, %s52
    %p54 = scmp.eq.s32.totalorder %s14, 0
    %p55 = por %p53, %p54
    %s57 = sadd.s32 %s56, 1
    %p60 = scmp.eq.s32.totalorder %s8, 5
    %p61 = scmp.ne.s32.totalorder %s56, %s58
    %p62 = scmp.eq.s32.totalorder %s8, 0
    %p63 = por %p61, %p62
    %p64 = scmp.ne.s32.totalorder %s56, %s58
    %p65 = scmp.eq.s32.totalorder %s13, 5
    %p66 = por %p64, %p65
    %p67 = scmp.ne.s32.totalorder %s58, %s59
    %p68 = scmp.eq.s32.totalorder %s13, 0
    %p69 = por %p67, %p68
    %p70 = scmp.ne.s32.totalorder %s58, %s59
    %p71 = scmp.eq.s32.totalorder %s14, 5
    %p72 = por %p70, %p71
    %p74 = scmp.ne.s32.totalorder %s59, %s73
    %p75 = scmp.eq.s32.totalorder %s14, 0
    %p76 = por %p74, %p75
    %s77 = ssub.s32 %s15, %s27
    %s78 = ssub.s32 %s16, %s23
    %s79 = sor.u32 %s77, %s78
    %p80 = scmp.eq.s32.totalorder %s79, 0
    %s82 = sadd.s32 %s81, 1
    %s83 = scalar_select %p80, %s81, %s82
    %p86 = pneg %p80
    %p87 = scmp.eq.s32.totalorder %s8, 5
    %p88 = por %p86, %p87
    %p89 = scmp.ne.s32.totalorder %s81, %s84
    %p90 = scmp.eq.s32.totalorder %s8, 0
    %p91 = por %p89, %p90
    %p92 = scmp.ne.s32.totalorder %s81, %s84
    %p93 = scmp.eq.s32.totalorder %s13, 5
    %p94 = por %p92, %p93
    %p95 = scmp.ne.s32.totalorder %s84, %s85
    %p96 = scmp.eq.s32.totalorder %s13, 0
    %p97 = por %p95, %p96
    %p98 = scmp.ne.s32.totalorder %s84, %s85
    %p99 = scmp.eq.s32.totalorder %s14, 5
    %p100 = por %p98, %p99
    %p102 = scmp.ne.s32.totalorder %s85, %s101
    %p103 = scmp.eq.s32.totalorder %s14, 0
    %p104 = por %p102, %p103
    %p105 = scmp.le.s32.totalorder 1, %s8
    %p106 = scmp.lt.s32.totalorder %s8, 7
    %p107 = pnand %p105, %p106
    %p108 = pneg %p107
    // Predicated region
    $region9: #{conv_bn_silu.3} parent=5 // pred_check
      _
    $region10: #{conv_bn_silu.3} parent=5 // pred_check_branch
      %110 = sbr.rel (%p107) target = $region12
    $region11: #{conv_bn_silu.3} parent=5 // pred_region
      %s111 = ssub.s32 %s8, 1
      // Predicated region
      $region13: #{conv_bn_silu.3} parent=11 // pred_check
        %p112 = pneg %p69
      $region14: #{conv_bn_silu.3} parent=11 // pred_check_branch
        %114 = sbr.rel (%p112) target = $region16
      $region15: #{conv_bn_silu.3} parent=11 // pred_region
        _
      $region16: #{conv_bn_silu.3} parent=11 // pred_fallthru
        _
    $region12: #{conv_bn_silu.3} parent=5 // pred_fallthru
      _
    %p115 = scmp.lt.s32.totalorder %s8, 6
    // Predicated region
    $region17: #{conv_bn_silu.3} parent=5 // pred_check
      %p116 = pneg %p115
    $region18: #{conv_bn_silu.3} parent=5 // pred_check_branch
      %118 = sbr.rel (%p116) target = $region20
    $region19: #{conv_bn_silu.3} parent=5 // pred_region
      // Predicated region
      $region21: #{conv_bn_silu.3} parent=19 // pred_check
        %p119 = pneg %p42
      $region22: #{conv_bn_silu.3} parent=19 // pred_check_branch
        %121 = sbr.rel (%p119) target = $region24
      $region23: #{conv_bn_silu.3} parent=19 // pred_region
        %p122 = scmp.lt.s32.totalorder %s15, 1
        %s123 = scalar_select %p122, %s15, 1
        %p124 = scmp.lt.s32.totalorder %s16, 2
        %s125 = scalar_select %p124, %s16, 2
        %s126 = smul.addr %s123, 3
        %s127 = sadd.s32 %s125, %s126
        %s128 = smul.addr %s127, 4
        %s129 = scalar_lea.vmem %s0, %s128
      $region24: #{conv_bn_silu.3} parent=19 // pred_fallthru
        _
    $region20: #{conv_bn_silu.3} parent=5 // pred_fallthru
      _
    %p130 = scmp.le.s32.totalorder 1, %s8
    %p131 = scmp.lt.s32.totalorder %s8, 7
    %p132 = pnand %p130, %p131
    %p133 = pneg %p132
    // Predicated region
    $region25: #{conv_bn_silu.3} parent=5 // pred_check
      _
    $region26: #{conv_bn_silu.3} parent=5 // pred_check_branch
      %135 = sbr.rel (%p132) target = $region28
    $region27: #{conv_bn_silu.3} parent=5 // pred_region
      %s136 = ssub.s32 %s8, 1
      %p137 = scmp.lt.s32.totalorder %s17, 1
      %s138 = scalar_select %p137, %s17, 1
      %p139 = scmp.lt.s32.totalorder %s18, 2
      %s140 = scalar_select %p139, %s18, 2
      %s141 = smul.addr %s138, 3
      %s142 = sadd.s32 %s140, %s141
      %s143 = smul.addr %s142, 4
      %s144 = scalar_lea.vmem %s0, %s143
      %p145 = pneg %p48
      %p146 = pneg %p45
      %p147 = pneg %p69
      %p148 = pneg %p66
      %p149 = pneg %p97
      %p150 = pneg %p94
      %p151 = scmp.lt.s32.totalorder %s17, 1
      %s152 = scalar_select %p151, %s17, 1
      %p153 = scmp.lt.s32.totalorder %s18, 2
      %s154 = scalar_select %p153, %s18, 2
      %s155 = smul.addr %s152, 3
      %s156 = sadd.s32 %s154, %s155
      %s157 = smul.addr %s156, 4
      %s158 = scalar_lea.vmem %s2, %s157
      %p159 = scmp.lt.s32.totalorder %s17, 1
      %s160 = scalar_select %p159, %s17, 1
      %p161 = scmp.lt.s32.totalorder %s18, 2
      %s162 = scalar_select %p161, %s18, 2
      %s163 = smul.addr %s160, 3
      %s164 = sadd.s32 %s162, %s163
      %s165 = smul.addr %s164, 4
      %s166 = scalar_lea.vmem %s0, %s165
      %p167 = scmp.lt.s32.totalorder %s17, 1
      %s168 = scalar_select %p167, %s17, 1
      %p169 = scmp.lt.s32.totalorder %s18, 2
      %s170 = scalar_select %p169, %s18, 2
      %s171 = smul.addr %s168, 3
      %s172 = sadd.s32 %s170, %s171
      %s173 = smul.addr %s172, 4
      %s174 = scalar_lea.vmem %s2, %s173
      %v175 = vld [vmem:[%s166] sm:$0xf]
      %v176 = vunpack.c.l.bf16 %v175
      %v177 = vld [vmem:[%s1] sm:$0xff]
      %179 = vset.pattern.permute.xlu0 0
      %180 = vperm.xlu0 %179, %v177
      %v181 = vpop.permute.xlu0 %180
      %v183 = vmul.f32 %v176, %v181
      %184 = vset.pattern.permute.xlu0 1
      %185 = vperm.xlu0 %184, %v177
      %v186 = vpop.permute.xlu0 %185
      %v188 = vadd.f32 %v183, %v186
      %v189 = vxor.u32 %v188, 2147483648
      %v190 = vmul.f32 %v189, 1.442695
      %v191 = vpow.pop %v190
      %v192 = vadd.f32 %v191, 1.0
      %v193 = vrcp.pop %v192
      %v194 = vmul.f32 1.0, %v193
      %v195 = vmul.f32 %v188, %v194
      %v196 = vpack.c.bf16 %v195, %v195
      %197 = vst [vmem:[%s174] sm:$0xf] %v196
      %p198 = scmp.lt.s32.totalorder %s17, 1
      %s199 = scalar_select %p198, %s17, 1
      %p200 = scmp.lt.s32.totalorder %s18, 2
      %s201 = scalar_select %p200, %s18, 2
      %s202 = smul.addr %s199, 3
      %s203 = sadd.s32 %s201, %s202
      %s204 = smul.addr %s203, 4
      %s205 = scalar_lea.vmem %s2, %s204
      // Predicated region
      $region29: #{conv_bn_silu.3} parent=27 // pred_check
        %p206 = pneg %p94
      $region30: #{conv_bn_silu.3} parent=27 // pred_check_branch
        %208 = sbr.rel (%p206) target = $region32
      $region31: #{conv_bn_silu.3} parent=27 // pred_region
        _
      $region32: #{conv_bn_silu.3} parent=27 // pred_fallthru
        _
    $region28: #{conv_bn_silu.3} parent=5 // pred_fallthru
      _
    %p209 = scmp.le.s32.totalorder 2, %s8
    // Predicated region
    $region33: #{conv_bn_silu.3} parent=5 // pred_check
      %p210 = pneg %p209
    $region34: #{conv_bn_silu.3} parent=5 // pred_check_branch
      %212 = sbr.rel (%p210) target = $region36
    $region35: #{conv_bn_silu.3} parent=5 // pred_region
      %s213 = ssub.s32 %s8, 2
      // Predicated region
      $region37: #{conv_bn_silu.3} parent=35 // pred_check
        %p214 = pneg %p100
      $region38: #{conv_bn_silu.3} parent=35 // pred_check_branch
        %216 = sbr.rel (%p214) target = $region40
      $region39: #{conv_bn_silu.3} parent=35 // pred_region
        %p217 = scmp.lt.s32.totalorder %s19, 1
        %s218 = scalar_select %p217, %s19, 1
        %p219 = scmp.lt.s32.totalorder %s20, 2
        %s220 = scalar_select %p219, %s20, 2
        %s221 = smul.addr %s218, 3
        %s222 = sadd.s32 %s220, %s221
        %s223 = smul.addr %s222, 4
        %s224 = scalar_lea.vmem %s2, %s223
      $region40: #{conv_bn_silu.3} parent=35 // pred_fallthru
        _
    $region36: #{conv_bn_silu.3} parent=5 // pred_fallthru
      _
  $region6: #{conv_bn_silu.3} parent=0 // loop_footer
    %s12 = sadd.s32 1, %s8
  $region7: #{conv_bn_silu.3} parent=0 // loop_footer_branch
    %7 = sbr.rel target = $region3
  $region8: #{conv_bn_silu.3} parent=0 // loop_exit
    _

// kernel: conv_bn_silu.2
$region0: #{conv_bn_silu.2}
  #allocation0 [shape = 'u32[]', space=smem, size = 0x4, offset = 0x4, fixed_abs, tag = 'smem constant byte address 0x4 - core index']
  #allocation1 [shape = 'u32[144,128]{1,0:T(1,128)}', space=vmem, size = 0x12000, scoped, tag = 'internal scratch']
  %s0 = inlined_call_operand.vmem [shape: bf16[2,8,384], index: 0, kind: input, shape index: {}, may-alias: {0,1}]
  %s1 = inlined_call_operand.vmem [shape: bf16[2,8,384], index: 1, kind: input, shape index: {}, may-alias: {0,1}]
  %s2 = inlined_call_operand.vmem [shape: bf16[9,8,8], index: 2, kind: input, shape index: {}]
  %s3 = inlined_call_operand.vmem [shape: f32[1,384], index: 3, kind: input, shape index: {}]
  %s4 = inlined_call_operand.vmem [shape: bf16[2,8,384], index: 4, kind: output, shape index: {0}]
  %s5 = inlined_call_operand.vmem [shape: f32[6,8,128], index: 5, kind: output, shape index: {1}]
  %6 = xla_tuple %s4, %s5
  %s7 = sld [smem:[#allocation0]]
  $region57: #{conv_bn_silu.2} parent=0
    _
  %s9 = ssub.s32 1, %s7
  %s10 = scalar_select 0, %s9, %s7
  loop: start=0, step=1, limit=8
  $region2: #{conv_bn_silu.2} parent=0 // loop_pre_header
    _
  $region3: #{conv_bn_silu.2} parent=0 // loop_header
    %s12 = sphi 0, %s16
    %p13 = scmp.ge.s32.totalorder %s12, 8
    %s19 = sphi 0, %s31
    %s20 = sphi 0, %s27
    %s21 = sphi 0, %s19
    %s22 = sphi 0, %s20
    %s23 = sphi 0, %s21
    %s24 = sphi 0, %s22
    %s36 = sphi 0, %s38
    %s39 = sphi 0, %s36
    %s40 = sphi 0, %s39
    %s56 = sphi 0, %s40
    %s70 = sphi 0, %s72
    %s73 = sphi 0, %s70
    %s74 = sphi 0, %s73
    %s90 = sphi 0, %s74
    %s94 = sphi 0, %s94
    %s96 = sphi 0, %s94
    %s97 = sphi 0, %s96
    %s111 = sphi 0, %s97
    %s117 = sphi 0, %s119
    %s120 = sphi 0, %s117
    %s121 = sphi 0, %s120
    %s137 = sphi 0, %s121
    %s145 = sphi 0, %s147
    %s148 = sphi 0, %s145
    %s149 = sphi 0, %s148
    %s165 = sphi 0, %s149
    %s175 = sphi 0, %s177
    %s178 = sphi 0, %s175
    %s179 = sphi 0, %s178
    %s195 = sphi 0, %s179
  $region4: #{conv_bn_silu.2} parent=0 // loop_header_branch
    %15 = sbr.rel (%p13) target = $region8
  $region5: #{conv_bn_silu.2} parent=0 // loop_body
    %s17 = ssub.s32 %s12, 1
    %s18 = ssub.s32 %s12, 2
    %s25 = sadd.s32 1, %s20
    %p26 = scmp.ge.s32.totalorder %s25, 3
    %s27 = scalar_select %p26, 0, %s25
    %s28 = sadd.s32 1, %s19
    %s29 = scalar_select %p26, %s28, %s19
    %p30 = scmp.ge.s32.totalorder %s29, 2
    %s31 = scalar_select %p30, 0, %s29
    %s32 = ssub.s32 %s19, %s31
    %s33 = ssub.s32 %s20, %s27
    %s34 = sor.u32 %s32, %s33
    %p35 = scmp.eq.s32.totalorder %s34, 0
    %s37 = sadd.s32 %s36, 1
    %s38 = scalar_select %p35, %s36, %s37
    %p41 = pneg %p35
    %p42 = scmp.eq.s32.totalorder %s12, 5
    %p43 = por %p41, %p42
    %p44 = scmp.ne.s32.totalorder %s36, %s39
    %p45 = scmp.eq.s32.totalorder %s12, 0
    %p46 = por %p44, %p45
    %p47 = scmp.ne.s32.totalorder %s36, %s39
    %p48 = scmp.eq.s32.totalorder %s17, 5
    %p49 = por %p47, %p48
    %p50 = scmp.ne.s32.totalorder %s39, %s40
    %p51 = scmp.eq.s32.totalorder %s17, 0
    %p52 = por %p50, %p51
    %p53 = scmp.ne.s32.totalorder %s39, %s40
    %p54 = scmp.eq.s32.totalorder %s18, 5
    %p55 = por %p53, %p54
    %p57 = scmp.ne.s32.totalorder %s40, %s56
    %p58 = scmp.eq.s32.totalorder %s18, 0
    %p59 = por %p57, %p58
    %s60 = sadd.s32 %s20, 1
    %p61 = scmp.lt.s32.totalorder %s60, 2
    %s62 = scalar_select %p61, %s60, 2
    %s63 = sadd.s32 %s27, 1
    %p64 = scmp.lt.s32.totalorder %s63, 2
    %s65 = scalar_select %p64, %s63, 2
    %s66 = ssub.s32 %s19, %s31
    %s67 = ssub.s32 %s62, %s65
    %s68 = sor.u32 %s66, %s67
    %p69 = scmp.eq.s32.totalorder %s68, 0
    %s71 = sadd.s32 %s70, 1
    %s72 = scalar_select %p69, %s70, %s71
    %p75 = pneg %p69
    %p76 = scmp.eq.s32.totalorder %s12, 5
    %p77 = por %p75, %p76
    %p78 = scmp.ne.s32.totalorder %s70, %s73
    %p79 = scmp.eq.s32.totalorder %s12, 0
    %p80 = por %p78, %p79
    %p81 = scmp.ne.s32.totalorder %s70, %s73
    %p82 = scmp.eq.s32.totalorder %s17, 5
    %p83 = por %p81, %p82
    %p84 = scmp.ne.s32.totalorder %s73, %s74
    %p85 = scmp.eq.s32.totalorder %s17, 0
    %p86 = por %p84, %p85
    %p87 = scmp.ne.s32.totalorder %s73, %s74
    %p88 = scmp.eq.s32.totalorder %s18, 5
    %p89 = por %p87, %p88
    %p91 = scmp.ne.s32.totalorder %s74, %s90
    %p92 = scmp.eq.s32.totalorder %s18, 0
    %p93 = por %p91, %p92
    %s95 = sadd.s32 %s94, 1
    %p98 = scmp.eq.s32.totalorder %s12, 5
    %p99 = scmp.ne.s32.totalorder %s94, %s96
    %p100 = scmp.eq.s32.totalorder %s12, 0
    %p101 = por %p99, %p100
    %p102 = scmp.ne.s32.totalorder %s94, %s96
    %p103 = scmp.eq.s32.totalorder %s17, 5
    %p104 = por %p102, %p103
    %p105 = scmp.ne.s32.totalorder %s96, %s97
    %p106 = scmp.eq.s32.totalorder %s17, 0
    %p107 = por %p105, %p106
    %p108 = scmp.ne.s32.totalorder %s96, %s97
    %p109 = scmp.eq.s32.totalorder %s18, 5
    %p110 = por %p108, %p109
    %p112 = scmp.ne.s32.totalorder %s97, %s111
    %p113 = scmp.eq.s32.totalorder %s18, 0
    %p114 = por %p112, %p113
    %s115 = ssub.s32 %s20, %s27
    %p116 = scmp.eq.s32.totalorder %s115, 0
    %s118 = sadd.s32 %s117, 1
    %s119 = scalar_select %p116, %s117, %s118
    %p122 = pneg %p116
    %p123 = scmp.eq.s32.totalorder %s12, 5
    %p124 = por %p122, %p123
    %p125 = scmp.ne.s32.totalorder %s117, %s120
    %p126 = scmp.eq.s32.totalorder %s12, 0
    %p127 = por %p125, %p126
    %p128 = scmp.ne.s32.totalorder %s117, %s120
    %p129 = scmp.eq.s32.totalorder %s17, 5
    %p130 = por %p128, %p129
    %p131 = scmp.ne.s32.totalorder %s120, %s121
    %p132 = scmp.eq.s32.totalorder %s17, 0
    %p133 = por %p131, %p132
    %p134 = scmp.ne.s32.totalorder %s120, %s121
    %p135 = scmp.eq.s32.totalorder %s18, 5
    %p136 = por %p134, %p135
    %p138 = scmp.ne.s32.totalorder %s121, %s137
    %p139 = scmp.eq.s32.totalorder %s18, 0
    %p140 = por %p138, %p139
    %s141 = ssub.s32 %s19, %s31
    %s142 = ssub.s32 %s20, %s27
    %s143 = sor.u32 %s141, %s142
    %p144 = scmp.eq.s32.totalorder %s143, 0
    %s146 = sadd.s32 %s145, 1
    %s147 = scalar_select %p144, %s145, %s146
    %p150 = pneg %p144
    %p151 = scmp.eq.s32.totalorder %s12, 5
    %p152 = por %p150, %p151
    %p153 = scmp.ne.s32.totalorder %s145, %s148
    %p154 = scmp.eq.s32.totalorder %s12, 0
    %p155 = por %p153, %p154
    %p156 = scmp.ne.s32.totalorder %s145, %s148
    %p157 = scmp.eq.s32.totalorder %s17, 5
    %p158 = por %p156, %p157
    %p159 = scmp.ne.s32.totalorder %s148, %s149
    %p160 = scmp.eq.s32.totalorder %s17, 0
    %p161 = por %p159, %p160
    %p162 = scmp.ne.s32.totalorder %s148, %s149
    %p163 = scmp.eq.s32.totalorder %s18, 5
    %p164 = por %p162, %p163
    %p166 = scmp.ne.s32.totalorder %s149, %s165
    %p167 = scmp.eq.s32.totalorder %s18, 0
    %p168 = por %p166, %p167
    %s169 = smul.u32 %s19, 3
    %s170 = sadd.s32 %s169, %s20
    %s171 = smul.u32 %s31, 3
    %s172 = sadd.s32 %s171, %s27
    %s173 = ssub.s32 %s170, %s172
    %p174 = scmp.eq.s32.totalorder %s173, 0
    %s176 = sadd.s32 %s175, 1
    %s177 = scalar_select %p174, %s175, %s176
    %p180 = pneg %p174
    %p181 = scmp.eq.s32.totalorder %s12, 5
    %p182 = por %p180, %p181
    %p183 = scmp.ne.s32.totalorder %s175, %s178
    %p184 = scmp.eq.s32.totalorder %s12, 0
    %p185 = por %p183, %p184
    %p186 = scmp.ne.s32.totalorder %s175, %s178
    %p187 = scmp.eq.s32.totalorder %s17, 5
    %p188 = por %p186, %p187
    %p189 = scmp.ne.s32.totalorder %s178, %s179
    %p190 = scmp.eq.s32.totalorder %s17, 0
    %p191 = por %p189, %p190
    %p192 = scmp.ne.s32.totalorder %s178, %s179
    %p193 = scmp.eq.s32.totalorder %s18, 5
    %p194 = por %p192, %p193
    %p196 = scmp.ne.s32.totalorder %s179, %s195
    %p197 = scmp.eq.s32.totalorder %s18, 0
    %p198 = por %p196, %p197
    %p199 = scmp.le.s32.totalorder 1, %s12
    %p200 = scmp.lt.s32.totalorder %s12, 7
    %p201 = pnand %p199, %p200
    %p202 = pneg %p201
    // Predicated region
    $region9: #{conv_bn_silu.2} parent=5 // pred_check
      _
    $region10: #{conv_bn_silu.2} parent=5 // pred_check_branch
      %204 = sbr.rel (%p201) target = $region12
    $region11: #{conv_bn_silu.2} parent=5 // pred_region
      %s205 = ssub.s32 %s12, 1
      // Predicated region
      $region13: #{conv_bn_silu.2} parent=11 // pred_check
        %p206 = pneg %p107
      $region14: #{conv_bn_silu.2} parent=11 // pred_check_branch
        %208 = sbr.rel (%p206) target = $region16
      $region15: #{conv_bn_silu.2} parent=11 // pred_region
        _
      $region16: #{conv_bn_silu.2} parent=11 // pred_fallthru
        _
    $region12: #{conv_bn_silu.2} parent=5 // pred_fallthru
      _
    %p209 = scmp.lt.s32.totalorder %s12, 6
    // Predicated region
    $region17: #{conv_bn_silu.2} parent=5 // pred_check
      %p210 = pneg %p209
    $region18: #{conv_bn_silu.2} parent=5 // pred_check_branch
      %212 = sbr.rel (%p210) target = $region20
    $region19: #{conv_bn_silu.2} parent=5 // pred_region
      // Predicated region
      $region21: #{conv_bn_silu.2} parent=19 // pred_check
        %p213 = pneg %p46
      $region22: #{conv_bn_silu.2} parent=19 // pred_check_branch
        %215 = sbr.rel (%p213) target = $region24
      $region23: #{conv_bn_silu.2} parent=19 // pred_region
        %p216 = scmp.lt.s32.totalorder %s19, 1
        %s217 = scalar_select %p216, %s19, 1
        %p218 = scmp.lt.s32.totalorder %s20, 2
        %s219 = scalar_select %p218, %s20, 2
        %s220 = smul.addr %s217, 3
        %s221 = sadd.s32 %s219, %s220
        %s222 = smul.addr %s221, 4
        %s223 = scalar_lea.vmem %s0, %s222
      $region24: #{conv_bn_silu.2} parent=19 // pred_fallthru
        _
      // Predicated region
      $region25: #{conv_bn_silu.2} parent=19 // pred_check
        %p224 = pneg %p80
      $region26: #{conv_bn_silu.2} parent=19 // pred_check_branch
        %226 = sbr.rel (%p224) target = $region28
      $region27: #{conv_bn_silu.2} parent=19 // pred_region
        %s227 = sadd.s32 %s20, 1
        %p228 = scmp.lt.s32.totalorder %s227, 2
        %s229 = scalar_select %p228, %s227, 2
        %p230 = scmp.lt.s32.totalorder %s19, 1
        %s231 = scalar_select %p230, %s19, 1
        %p232 = scmp.lt.s32.totalorder %s229, 2
        %s233 = scalar_select %p232, %s229, 2
        %s234 = smul.addr %s231, 3
        %s235 = sadd.s32 %s233, %s234
        %s236 = smul.addr %s235, 4
        %s237 = scalar_lea.vmem %s1, %s236
        %s238 = sadd.s32 %s20, 1
        %p239 = scmp.lt.s32.totalorder %s238, 2
        %s240 = scalar_select %p239, %s238, 2
      $region28: #{conv_bn_silu.2} parent=19 // pred_fallthru
        _
      // Predicated region
      $region29: #{conv_bn_silu.2} parent=19 // pred_check
        %p241 = pneg %p127
      $region30: #{conv_bn_silu.2} parent=19 // pred_check_branch
        %243 = sbr.rel (%p241) target = $region32
      $region31: #{conv_bn_silu.2} parent=19 // pred_region
        %p244 = scmp.lt.s32.totalorder %s20, 2
        %s245 = scalar_select %p244, %s20, 2
        %s246 = scalar_lea.vmem %s3, %s245
      $region32: #{conv_bn_silu.2} parent=19 // pred_fallthru
        _
    $region20: #{conv_bn_silu.2} parent=5 // pred_fallthru
      _
    %p247 = scmp.le.s32.totalorder 1, %s12
    %p248 = scmp.lt.s32.totalorder %s12, 7
    %p249 = pnand %p247, %p248
    %p250 = pneg %p249
    // Predicated region
    $region33: #{conv_bn_silu.2} parent=5 // pred_check
      _
    $region34: #{conv_bn_silu.2} parent=5 // pred_check_branch
      %252 = sbr.rel (%p249) target = $region36
    $region35: #{conv_bn_silu.2} parent=5 // pred_region
      %s253 = ssub.s32 %s12, 1
      %p254 = scmp.lt.s32.totalorder %s21, 1
      %s255 = scalar_select %p254, %s21, 1
      %p256 = scmp.lt.s32.totalorder %s22, 2
      %s257 = scalar_select %p256, %s22, 2
      %s258 = smul.addr %s255, 3
      %s259 = sadd.s32 %s257, %s258
      %s260 = smul.addr %s259, 4
      %s261 = scalar_lea.vmem %s0, %s260
      %p262 = pneg %p52
      %p263 = pneg %p49
      %s264 = sadd.s32 %s22, 1
      %p265 = scmp.lt.s32.totalorder %s264, 2
      %s266 = scalar_select %p265, %s264, 2
      %p267 = scmp.lt.s32.totalorder %s21, 1
      %s268 = scalar_select %p267, %s21, 1
      %p269 = scmp.lt.s32.totalorder %s266, 2
      %s270 = scalar_select %p269, %s266, 2
      %s271 = smul.addr %s268, 3
      %s272 = sadd.s32 %s270, %s271
      %s273 = smul.addr %s272, 4
      %s274 = scalar_lea.vmem %s1, %s273
      %p275 = pneg %p86
      %p276 = pneg %p83
      %p277 = pneg %p107
      %p278 = pneg %p104
      %p279 = scmp.lt.s32.totalorder %s22, 2
      %s280 = scalar_select %p279, %s22, 2
      %s281 = scalar_lea.vmem %s3, %s280
      %p282 = pneg %p133
      %p283 = pneg %p130
      %p284 = pneg %p161
      %p285 = pneg %p158
      %p286 = scmp.lt.s32.totalorder %s21, 1
      %s287 = scalar_select %p286, %s21, 1
      %p288 = scmp.lt.s32.totalorder %s22, 2
      %s289 = scalar_select %p288, %s22, 2
      %s290 = smul.addr %s287, 3
      %s291 = sadd.s32 %s289, %s290
      %s292 = smul.addr %s291, 4
      %s293 = scalar_lea.vmem %s4, %s292
      %p294 = pneg %p191
      %p295 = pneg %p188
      %s296 = smul.u32 %s21, 3
      %s297 = sadd.s32 %s296, %s22
      %p298 = scmp.lt.s32.totalorder %s297, 5
      %s299 = scalar_select %p298, %s297, 5
      %s300 = smul.addr %s299, 8
      %s301 = scalar_lea.vmem %s5, %s300
      %p302 = scmp.lt.s32.totalorder %s21, 1
      %s303 = scalar_select %p302, %s21, 1
      %p304 = scmp.lt.s32.totalorder %s22, 2
      %s305 = scalar_select %p304, %s22, 2
      %s306 = smul.addr %s303, 3
      %s307 = sadd.s32 %s305, %s306
      %s308 = smul.addr %s307, 4
      %s309 = scalar_lea.vmem %s0, %s308
      %s310 = sadd.s32 %s22, 1
      %p311 = scmp.lt.s32.totalorder %s310, 2
      %s312 = scalar_select %p311, %s310, 2
      %p313 = scmp.lt.s32.totalorder %s21, 1
      %s314 = scalar_select %p313, %s21, 1
      %p315 = scmp.lt.s32.totalorder %s312, 2
      %s316 = scalar_select %p315, %s312, 2
      %s317 = smul.addr %s314, 3
      %s318 = sadd.s32 %s316, %s317
      %s319 = smul.addr %s318, 4
      %s320 = scalar_lea.vmem %s1, %s319
      %s321 = sadd.s32 %s22, 1
      %p322 = scmp.lt.s32.totalorder %s321, 2
      %s323 = scalar_select %p322, %s321, 2
      %p324 = scmp.lt.s32.totalorder %s22, 2
      %s325 = scalar_select %p324, %s22, 2
      %s326 = scalar_lea.vmem %s3, %s325
      %p327 = scmp.lt.s32.totalorder %s21, 1
      %s328 = scalar_select %p327, %s21, 1
      %p329 = scmp.lt.s32.totalorder %s22, 2
      %s330 = scalar_select %p329, %s22, 2
      %s331 = smul.addr %s328, 3
      %s332 = sadd.s32 %s330, %s331
      %s333 = smul.addr %s332, 4
      %s334 = scalar_lea.vmem %s4, %s333
      %s335 = smul.u32 %s21, 3
      %s336 = sadd.s32 %s335, %s22
      %p337 = scmp.lt.s32.totalorder %s336, 5
      %s338 = scalar_select %p337, %s336, 5
      %s339 = smul.addr %s338, 8
      %s340 = scalar_lea.vmem %s5, %s339
      %s341 = smul.u32 %s21, 3
      %s342 = sadd.s32 %s341, %s22
      %v344 = vld [vmem:[%s309] sm:$0xf]
      %v345 = vld [vmem:[%s320] sm:$0xf]
      %v346 = vld [vmem:[%s2] sm:$0xf]
      %s347 = scalar_lea.vmem %s2, 4
      %v348 = vld [vmem:[%s347] sm:$0xf]
      %351 = vrot.lane.b32.xlu0 %v344, 127
      %v352 = vpop.permute.xlu0 %351
      %353 = vrot.lane.b32.xlu0 %v345, 127
      %v354 = vpop.permute.xlu0 %353
      %vm355 = vcmask 1039360
      %v356 = vsel %vm355, %v352, %v354
      %vm357 = vcmask 64512
      %v359 = vsel %vm357, %v348, 0
      %vm361 = vcmask 1043456
      %v363 = vsel %vm361, %v356, 0
      %365 = vmatprep.subr.bf16.mxu0 0
      %366 = vmatpush1.bf16.msra.mxu0 %v363
      %367 = vmatprep.subr.bf16.mxu0 0
      %368 = vmatpush1.bf16.msra.mxu0 0
      %369 = vmatprep.subr.bf16.mxu0 0
      %370 = vmatpush1.bf16.msra.mxu0 0
      %371 = vmatprep.subr.bf16.mxu0 0
      %372 = vmatpush1.bf16.msra.mxu0 0
      %373 = vmatprep.subr.bf16.mxu0 0
      %374 = vmatpush1.bf16.msra.mxu0 0
      %375 = vmatprep.subr.bf16.mxu0 0
      %376 = vmatpush1.bf16.msra.mxu0 0
      %377 = vmatprep.subr.bf16.mxu0 0
      %378 = vmatpush1.bf16.msra.mxu0 0
      %379 = vmatprep.subr.bf16.mxu0 0
      %380 = vmatpush1.bf16.msra.mxu0 0
      %381 = vmatprep.subr.bf16.mxu0 0
      %382 = vmatpush1.bf16.msra.mxu0 0
      %383 = vmatprep.subr.bf16.mxu0 0
      %384 = vmatpush1.bf16.msra.mxu0 0
      %385 = vmatprep.subr.bf16.mxu0 0
      %386 = vmatpush1.bf16.msra.mxu0 0
      %387 = vmatprep.subr.bf16.mxu0 0
      %388 = vmatpush1.bf16.msra.mxu0 0
      %389 = vmatprep.subr.bf16.mxu0 0
      %390 = vmatpush1.bf16.msra.mxu0 0
      %391 = vmatprep.subr.bf16.mxu0 0
      %392 = vmatpush1.bf16.msra.mxu0 0
      %393 = vmatprep.subr.bf16.mxu0 0
      %394 = vmatpush1.bf16.msra.mxu0 0
      %395 = vmatprep.subr.bf16.mxu0 0
      %396 = vmatpush1.bf16.msra.mxu0 0
      %397 = vmatprep.mubr.bf16.mxu0 0
      %398 = vmatmul.mubr.bf16.gmra.mrb[0].mxu0 %v359
      %v399 = vpop.f32.mrb[0].mxu0
      %v400 = vadd.f32 0.0, %v399
      %v401 = vpop.f32.mrb[0].mxu0
      %v402 = vpop.f32.mrb[0].mxu0
      %v403 = vpop.f32.mrb[0].mxu0
      %404 = vdwg.mxu0
      %v406 = vsel %vm357, %v346, 0
      %v409 = vsel %vm361, %v344, 0
      %411 = vmatprep.subr.bf16.mxu0 0
      %412 = vmatpush1.bf16.msra.mxu0 %v409
      %413 = vmatprep.subr.bf16.mxu0 0
      %414 = vmatpush1.bf16.msra.mxu0 0
      %415 = vmatprep.subr.bf16.mxu0 0
      %416 = vmatpush1.bf16.msra.mxu0 0
      %417 = vmatprep.subr.bf16.mxu0 0
      %418 = vmatpush1.bf16.msra.mxu0 0
      %419 = vmatprep.subr.bf16.mxu0 0
      %420 = vmatpush1.bf16.msra.mxu0 0
      %421 = vmatprep.subr.bf16.mxu0 0
      %422 = vmatpush1.bf16.msra.mxu0 0
      %423 = vmatprep.subr.bf16.mxu0 0
      %424 = vmatpush1.bf16.msra.mxu0 0
      %425 = vmatprep.subr.bf16.mxu0 0
      %426 = vmatpush1.bf16.msra.mxu0 0
      %427 = vmatprep.subr.bf16.mxu0 0
      %428 = vmatpush1.bf16.msra.mxu0 0
      %429 = vmatprep.subr.bf16.mxu0 0
      %430 = vmatpush1.bf16.msra.mxu0 0
      %431 = vmatprep.subr.bf16.mxu0 0
      %432 = vmatpush1.bf16.msra.mxu0 0
      %433 = vmatprep.subr.bf16.mxu0 0
      %434 = vmatpush1.bf16.msra.mxu0 0
      %435 = vmatprep.subr.bf16.mxu0 0
      %436 = vmatpush1.bf16.msra.mxu0 0
      %437 = vmatprep.subr.bf16.mxu0 0
      %438 = vmatpush1.bf16.msra.mxu0 0
      %439 = vmatprep.subr.bf16.mxu0 0
      %440 = vmatpush1.bf16.msra.mxu0 0
      %441 = vmatprep.subr.bf16.mxu0 0
      %442 = vmatpush1.bf16.msra.mxu0 0
      %443 = vmatprep.mubr.bf16.mxu0 0
      %444 = vmatmul.mubr.bf16.gmra.mrb[0].mxu0 %v406
      %v445 = vpop.f32.mrb[0].mxu0
      %v446 = vadd.f32 %v400, %v445
      %v447 = vpop.f32.mrb[0].mxu0
      %v448 = vpop.f32.mrb[0].mxu0
      %v449 = vpop.f32.mrb[0].mxu0
      %450 = vdwg.mxu0
      %s451 = scalar_lea.vmem %s2, 8
      %v452 = vld [vmem:[%s451] sm:$0xf]
      %453 = vrot.lane.b32.xlu0 %v344, 126
      %v454 = vpop.permute.xlu0 %453
      %455 = vrot.lane.b32.xlu0 %v345, 126
      %v456 = vpop.permute.xlu0 %455
      %vm457 = vcmask 1031168
      %v458 = vsel %vm457, %v454, %v456
      %v460 = vsel %vm357, %v452, 0
      %v463 = vsel %vm361, %v458, 0
      %465 = vmatprep.subr.bf16.mxu0 0
      %466 = vmatpush1.bf16.msra.mxu0 %v463
      %467 = vmatprep.subr.bf16.mxu0 0
      %468 = vmatpush1.bf16.msra.mxu0 0
      %469 = vmatprep.subr.bf16.mxu0 0
      %470 = vmatpush1.bf16.msra.mxu0 0
      %471 = vmatprep.subr.bf16.mxu0 0
      %472 = vmatpush1.bf16.msra.mxu0 0
      %473 = vmatprep.subr.bf16.mxu0 0
      %474 = vmatpush1.bf16.msra.mxu0 0
      %475 = vmatprep.subr.bf16.mxu0 0
      %476 = vmatpush1.bf16.msra.mxu0 0
      %477 = vmatprep.subr.bf16.mxu0 0
      %478 = vmatpush1.bf16.msra.mxu0 0
      %479 = vmatprep.subr.bf16.mxu0 0
      %480 = vmatpush1.bf16.msra.mxu0 0
      %481 = vmatprep.subr.bf16.mxu0 0
      %482 = vmatpush1.bf16.msra.mxu0 0
      %483 = vmatprep.subr.bf16.mxu0 0
      %484 = vmatpush1.bf16.msra.mxu0 0
      %485 = vmatprep.subr.bf16.mxu0 0
      %486 = vmatpush1.bf16.msra.mxu0 0
      %487 = vmatprep.subr.bf16.mxu0 0
      %488 = vmatpush1.bf16.msra.mxu0 0
      %489 = vmatprep.subr.bf16.mxu0 0
      %490 = vmatpush1.bf16.msra.mxu0 0
      %491 = vmatprep.subr.bf16.mxu0 0
      %492 = vmatpush1.bf16.msra.mxu0 0
      %493 = vmatprep.subr.bf16.mxu0 0
      %494 = vmatpush1.bf16.msra.mxu0 0
      %495 = vmatprep.subr.bf16.mxu0 0
      %496 = vmatpush1.bf16.msra.mxu0 0
      %497 = vmatprep.mubr.bf16.mxu0 0
      %498 = vmatmul.mubr.bf16.gmra.mrb[0].mxu0 %v460
      %v499 = vpop.f32.mrb[0].mxu0
      %v500 = vadd.f32 0.0, %v499
      %v501 = vpop.f32.mrb[0].mxu0
      %v502 = vpop.f32.mrb[0].mxu0
      %v503 = vpop.f32.mrb[0].mxu0
      %504 = vdwg.mxu0
      %v505 = vadd.f32 %v446, %v500
      %s506 = scalar_lea.vmem %s2, 12
      %v507 = vld [vmem:[%s506] sm:$0xf]
      %508 = vrot.lane.b32.xlu0 %v344, 110
      %v509 = vpop.permute.xlu0 %508
      %510 = vrot.lane.b32.xlu0 %v345, 110
      %v511 = vpop.permute.xlu0 %510
      %vm512 = vcmask 900096
      %v513 = vsel %vm512, %v509, %v511
      %v515 = vsel %vm357, %v507, 0
      %v518 = vsel %vm361, %v513, 0
      %520 = vmatprep.subr.bf16.mxu0 0
      %521 = vmatpush1.bf16.msra.mxu0 %v518
      %522 = vmatprep.subr.bf16.mxu0 0
      %523 = vmatpush1.bf16.msra.mxu0 0
      %524 = vmatprep.subr.bf16.mxu0 0
      %525 = vmatpush1.bf16.msra.mxu0 0
      %526 = vmatprep.subr.bf16.mxu0 0
      %527 = vmatpush1.bf16.msra.mxu0 0
      %528 = vmatprep.subr.bf16.mxu0 0
      %529 = vmatpush1.bf16.msra.mxu0 0
      %530 = vmatprep.subr.bf16.mxu0 0
      %531 = vmatpush1.bf16.msra.mxu0 0
      %532 = vmatprep.subr.bf16.mxu0 0
      %533 = vmatpush1.bf16.msra.mxu0 0
      %534 = vmatprep.subr.bf16.mxu0 0
      %535 = vmatpush1.bf16.msra.mxu0 0
      %536 = vmatprep.subr.bf16.mxu0 0
      %537 = vmatpush1.bf16.msra.mxu0 0
      %538 = vmatprep.subr.bf16.mxu0 0
      %539 = vmatpush1.bf16.msra.mxu0 0
      %540 = vmatprep.subr.bf16.mxu0 0
      %541 = vmatpush1.bf16.msra.mxu0 0
      %542 = vmatprep.subr.bf16.mxu0 0
      %543 = vmatpush1.bf16.msra.mxu0 0
      %544 = vmatprep.subr.bf16.mxu0 0
      %545 = vmatpush1.bf16.msra.mxu0 0
      %546 = vmatprep.subr.bf16.mxu0 0
      %547 = vmatpush1.bf16.msra.mxu0 0
      %548 = vmatprep.subr.bf16.mxu0 0
      %549 = vmatpush1.bf16.msra.mxu0 0
      %550 = vmatprep.subr.bf16.mxu0 0
      %551 = vmatpush1.bf16.msra.mxu0 0
      %552 = vmatprep.mubr.bf16.mxu0 0
      %553 = vmatmul.mubr.bf16.gmra.mrb[0].mxu0 %v515
      %v554 = vpop.f32.mrb[0].mxu0
      %v555 = vadd.f32 0.0, %v554
      %v556 = vpop.f32.mrb[0].mxu0
      %v557 = vpop.f32.mrb[0].mxu0
      %v558 = vpop.f32.mrb[0].mxu0
      %559 = vdwg.mxu0
      %v560 = vadd.f32 %v505, %v555
      %s561 = scalar_lea.vmem %s2, 16
      %v562 = vld [vmem:[%s561] sm:$0xf]
      %563 = vrot.lane.b32.xlu0 %v344, 109
      %v564 = vpop.permute.xlu0 %563
      %565 = vrot.lane.b32.xlu0 %v345, 109
      %v566 = vpop.permute.xlu0 %565
      %vm567 = vcmask 891904
      %v568 = vsel %vm567, %v564, %v566
      %v570 = vsel %vm357, %v562, 0
      %v573 = vsel %vm361, %v568, 0
      %575 = vmatprep.subr.bf16.mxu0 0
      %576 = vmatpush1.bf16.msra.mxu0 %v573
      %577 = vmatprep.subr.bf16.mxu0 0
      %578 = vmatpush1.bf16.msra.mxu0 0
      %579 = vmatprep.subr.bf16.mxu0 0
      %580 = vmatpush1.bf16.msra.mxu0 0
      %581 = vmatprep.subr.bf16.mxu0 0
      %582 = vmatpush1.bf16.msra.mxu0 0
      %583 = vmatprep.subr.bf16.mxu0 0
      %584 = vmatpush1.bf16.msra.mxu0 0
      %585 = vmatprep.subr.bf16.mxu0 0
      %586 = vmatpush1.bf16.msra.mxu0 0
      %587 = vmatprep.subr.bf16.mxu0 0
      %588 = vmatpush1.bf16.msra.mxu0 0
      %589 = vmatprep.subr.bf16.mxu0 0
      %590 = vmatpush1.bf16.msra.mxu0 0
      %591 = vmatprep.subr.bf16.mxu0 0
      %592 = vmatpush1.bf16.msra.mxu0 0
      %593 = vmatprep.subr.bf16.mxu0 0
      %594 = vmatpush1.bf16.msra.mxu0 0
      %595 = vmatprep.subr.bf16.mxu0 0
      %596 = vmatpush1.bf16.msra.mxu0 0
      %597 = vmatprep.subr.bf16.mxu0 0
      %598 = vmatpush1.bf16.msra.mxu0 0
      %599 = vmatprep.subr.bf16.mxu0 0
      %600 = vmatpush1.bf16.msra.mxu0 0
      %601 = vmatprep.subr.bf16.mxu0 0
      %602 = vmatpush1.bf16.msra.mxu0 0
      %603 = vmatprep.subr.bf16.mxu0 0
      %604 = vmatpush1.bf16.msra.mxu0 0
      %605 = vmatprep.subr.bf16.mxu0 0
      %606 = vmatpush1.bf16.msra.mxu0 0
      %607 = vmatprep.mubr.bf16.mxu0 0
      %608 = vmatmul.mubr.bf16.gmra.mrb[0].mxu0 %v570
      %v609 = vpop.f32.mrb[0].mxu0
      %v610 = vadd.f32 0.0, %v609
      %v611 = vpop.f32.mrb[0].mxu0
      %v612 = vpop.f32.mrb[0].mxu0
      %v613 = vpop.f32.mrb[0].mxu0
      %614 = vdwg.mxu0
      %v615 = vadd.f32 %v560, %v610
      %s616 = scalar_lea.vmem %s2, 20
      %v617 = vld [vmem:[%s616] sm:$0xf]
      %618 = vrot.lane.b32.xlu0 %v344, 108
      %v619 = vpop.permute.xlu0 %618
      %620 = vrot.lane.b32.xlu0 %v345, 108
      %v621 = vpop.permute.xlu0 %620
      %vm622 = vcmask 883712
      %v623 = vsel %vm622, %v619, %v621
      %v625 = vsel %vm357, %v617, 0
      %v628 = vsel %vm361, %v623, 0
      %630 = vmatprep.subr.bf16.mxu0 0
      %631 = vmatpush1.bf16.msra.mxu0 %v628
      %632 = vmatprep.subr.bf16.mxu0 0
      %633 = vmatpush1.bf16.msra.mxu0 0
      %634 = vmatprep.subr.bf16.mxu0 0
      %635 = vmatpush1.bf16.msra.mxu0 0
      %636 = vmatprep.subr.bf16.mxu0 0
      %637 = vmatpush1.bf16.msra.mxu0 0
      %638 = vmatprep.subr.bf16.mxu0 0
      %639 = vmatpush1.bf16.msra.mxu0 0
      %640 = vmatprep.subr.bf16.mxu0 0
      %641 = vmatpush1.bf16.msra.mxu0 0
      %642 = vmatprep.subr.bf16.mxu0 0
      %643 = vmatpush1.bf16.msra.mxu0 0
      %644 = vmatprep.subr.bf16.mxu0 0
      %645 = vmatpush1.bf16.msra.mxu0 0
      %646 = vmatprep.subr.bf16.mxu0 0
      %647 = vmatpush1.bf16.msra.mxu0 0
      %648 = vmatprep.subr.bf16.mxu0 0
      %649 = vmatpush1.bf16.msra.mxu0 0
      %650 = vmatprep.subr.bf16.mxu0 0
      %651 = vmatpush1.bf16.msra.mxu0 0
      %652 = vmatprep.subr.bf16.mxu0 0
      %653 = vmatpush1.bf16.msra.mxu0 0
      %654 = vmatprep.subr.bf16.mxu0 0
      %655 = vmatpush1.bf16.msra.mxu0 0
      %656 = vmatprep.subr.bf16.mxu0 0
      %657 = vmatpush1.bf16.msra.mxu0 0
      %658 = vmatprep.subr.bf16.mxu0 0
      %659 = vmatpush1.bf16.msra.mxu0 0
      %660 = vmatprep.subr.bf16.mxu0 0
      %661 = vmatpush1.bf16.msra.mxu0 0
      %662 = vmatprep.mubr.bf16.mxu0 0
      %663 = vmatmul.mubr.bf16.gmra.mrb[0].mxu0 %v625
      %v664 = vpop.f32.mrb[0].mxu0
      %v665 = vadd.f32 0.0, %v664
      %v666 = vpop.f32.mrb[0].mxu0
      %v667 = vpop.f32.mrb[0].mxu0
      %v668 = vpop.f32.mrb[0].mxu0
      %669 = vdwg.mxu0
      %v670 = vadd.f32 %v615, %v665
      %s671 = scalar_lea.vmem %s2, 24
      %v672 = vld [vmem:[%s671] sm:$0xf]
      %673 = vrot.lane.b32.xlu0 %v344, 92
      %v674 = vpop.permute.xlu0 %673
      %675 = vrot.lane.b32.xlu0 %v345, 92
      %v676 = vpop.permute.xlu0 %675
      %vm677 = vcmask 752640
      %v678 = vsel %vm677, %v674, %v676
      %v680 = vsel %vm357, %v672, 0
      %v683 = vsel %vm361, %v678, 0
      %685 = vmatprep.subr.bf16.mxu0 0
      %686 = vmatpush1.bf16.msra.mxu0 %v683
      %687 = vmatprep.subr.bf16.mxu0 0
      %688 = vmatpush1.bf16.msra.mxu0 0
      %689 = vmatprep.subr.bf16.mxu0 0
      %690 = vmatpush1.bf16.msra.mxu0 0
      %691 = vmatprep.subr.bf16.mxu0 0
      %692 = vmatpush1.bf16.msra.mxu0 0
      %693 = vmatprep.subr.bf16.mxu0 0
      %694 = vmatpush1.bf16.msra.mxu0 0
      %695 = vmatprep.subr.bf16.mxu0 0
      %696 = vmatpush1.bf16.msra.mxu0 0
      %697 = vmatprep.subr.bf16.mxu0 0
      %698 = vmatpush1.bf16.msra.mxu0 0
      %699 = vmatprep.subr.bf16.mxu0 0
      %700 = vmatpush1.bf16.msra.mxu0 0
      %701 = vmatprep.subr.bf16.mxu0 0
      %702 = vmatpush1.bf16.msra.mxu0 0
      %703 = vmatprep.subr.bf16.mxu0 0
      %704 = vmatpush1.bf16.msra.mxu0 0
      %705 = vmatprep.subr.bf16.mxu0 0
      %706 = vmatpush1.bf16.msra.mxu0 0
      %707 = vmatprep.subr.bf16.mxu0 0
      %708 = vmatpush1.bf16.msra.mxu0 0
      %709 = vmatprep.subr.bf16.mxu0 0
      %710 = vmatpush1.bf16.msra.mxu0 0
      %711 = vmatprep.subr.bf16.mxu0 0
      %712 = vmatpush1.bf16.msra.mxu0 0
      %713 = vmatprep.subr.bf16.mxu0 0
      %714 = vmatpush1.bf16.msra.mxu0 0
      %715 = vmatprep.subr.bf16.mxu0 0
      %716 = vmatpush1.bf16.msra.mxu0 0
      %717 = vmatprep.mubr.bf16.mxu0 0
      %718 = vmatmul.mubr.bf16.gmra.mrb[0].mxu0 %v680
      %v719 = vpop.f32.mrb[0].mxu0
      %v720 = vadd.f32 0.0, %v719
      %v721 = vpop.f32.mrb[0].mxu0
      %v722 = vpop.f32.mrb[0].mxu0
      %v723 = vpop.f32.mrb[0].mxu0
      %724 = vdwg.mxu0
      %v725 = vadd.f32 %v670, %v720
      %s726 = scalar_lea.vmem %s2, 28
      %v727 = vld [vmem:[%s726] sm:$0xf]
      %728 = vrot.lane.b32.xlu0 %v344, 91
      %v729 = vpop.permute.xlu0 %728
      %730 = vrot.lane.b32.xlu0 %v345, 91
      %v731 = vpop.permute.xlu0 %730
      %vm732 = vcmask 744448
      %v733 = vsel %vm732, %v729, %v731
      %v735 = vsel %vm357, %v727, 0
      %v738 = vsel %vm361, %v733, 0
      %740 = vmatprep.subr.bf16.mxu0 0
      %741 = vmatpush1.bf16.msra.mxu0 %v738
      %742 = vmatprep.subr.bf16.mxu0 0
      %743 = vmatpush1.bf16.msra.mxu0 0
      %744 = vmatprep.subr.bf16.mxu0 0
      %745 = vmatpush1.bf16.msra.mxu0 0
      %746 = vmatprep.subr.bf16.mxu0 0
      %747 = vmatpush1.bf16.msra.mxu0 0
      %748 = vmatprep.subr.bf16.mxu0 0
      %749 = vmatpush1.bf16.msra.mxu0 0
      %750 = vmatprep.subr.bf16.mxu0 0
      %751 = vmatpush1.bf16.msra.mxu0 0
      %752 = vmatprep.subr.bf16.mxu0 0
      %753 = vmatpush1.bf16.msra.mxu0 0
      %754 = vmatprep.subr.bf16.mxu0 0
      %755 = vmatpush1.bf16.msra.mxu0 0
      %756 = vmatprep.subr.bf16.mxu0 0
      %757 = vmatpush1.bf16.msra.mxu0 0
      %758 = vmatprep.subr.bf16.mxu0 0
      %759 = vmatpush1.bf16.msra.mxu0 0
      %760 = vmatprep.subr.bf16.mxu0 0
      %761 = vmatpush1.bf16.msra.mxu0 0
      %762 = vmatprep.subr.bf16.mxu0 0
      %763 = vmatpush1.bf16.msra.mxu0 0
      %764 = vmatprep.subr.bf16.mxu0 0
      %765 = vmatpush1.bf16.msra.mxu0 0
      %766 = vmatprep.subr.bf16.mxu0 0
      %767 = vmatpush1.bf16.msra.mxu0 0
      %768 = vmatprep.subr.bf16.mxu0 0
      %769 = vmatpush1.bf16.msra.mxu0 0
      %770 = vmatprep.subr.bf16.mxu0 0
      %771 = vmatpush1.bf16.msra.mxu0 0
      %772 = vmatprep.mubr.bf16.mxu0 0
      %773 = vmatmul.mubr.bf16.gmra.mrb[0].mxu0 %v735
      %v774 = vpop.f32.mrb[0].mxu0
      %v775 = vadd.f32 0.0, %v774
      %v776 = vpop.f32.mrb[0].mxu0
      %v777 = vpop.f32.mrb[0].mxu0
      %v778 = vpop.f32.mrb[0].mxu0
      %779 = vdwg.mxu0
      %v780 = vadd.f32 %v725, %v775
      %s781 = scalar_lea.vmem %s2, 32
      %v782 = vld [vmem:[%s781] sm:$0xf]
      %783 = vrot.lane.b32.xlu0 %v344, 90
      %v784 = vpop.permute.xlu0 %783
      %785 = vrot.lane.b32.xlu0 %v345, 90
      %v786 = vpop.permute.xlu0 %785
      %vm787 = vcmask 736256
      %v788 = vsel %vm787, %v784, %v786
      %v790 = vsel %vm357, %v782, 0
      %v793 = vsel %vm361, %v788, 0
      %795 = vmatprep.subr.bf16.mxu0 0
      %796 = vmatpush1.bf16.msra.mxu0 %v793
      %797 = vmatprep.subr.bf16.mxu0 0
      %798 = vmatpush1.bf16.msra.mxu0 0
      %799 = vmatprep.subr.bf16.mxu0 0
      %800 = vmatpush1.bf16.msra.mxu0 0
      %801 = vmatprep.subr.bf16.mxu0 0
      %802 = vmatpush1.bf16.msra.mxu0 0
      %803 = vmatprep.subr.bf16.mxu0 0
      %804 = vmatpush1.bf16.msra.mxu0 0
      %805 = vmatprep.subr.bf16.mxu0 0
      %806 = vmatpush1.bf16.msra.mxu0 0
      %807 = vmatprep.subr.bf16.mxu0 0
      %808 = vmatpush1.bf16.msra.mxu0 0
      %809 = vmatprep.subr.bf16.mxu0 0
      %810 = vmatpush1.bf16.msra.mxu0 0
      %811 = vmatprep.subr.bf16.mxu0 0
      %812 = vmatpush1.bf16.msra.mxu0 0
      %813 = vmatprep.subr.bf16.mxu0 0
      %814 = vmatpush1.bf16.msra.mxu0 0
      %815 = vmatprep.subr.bf16.mxu0 0
      %816 = vmatpush1.bf16.msra.mxu0 0
      %817 = vmatprep.subr.bf16.mxu0 0
      %818 = vmatpush1.bf16.msra.mxu0 0
      %819 = vmatprep.subr.bf16.mxu0 0
      %820 = vmatpush1.bf16.msra.mxu0 0
      %821 = vmatprep.subr.bf16.mxu0 0
      %822 = vmatpush1.bf16.msra.mxu0 0
      %823 = vmatprep.subr.bf16.mxu0 0
      %824 = vmatpush1.bf16.msra.mxu0 0
      %825 = vmatprep.subr.bf16.mxu0 0
      %826 = vmatpush1.bf16.msra.mxu0 0
      %827 = vmatprep.mubr.bf16.mxu0 0
      %828 = vmatmul.mubr.bf16.gmra.mrb[0].mxu0 %v790
      %v829 = vpop.f32.mrb[0].mxu0
      %v830 = vadd.f32 0.0, %v829
      %v831 = vpop.f32.mrb[0].mxu0
      %v832 = vpop.f32.mrb[0].mxu0
      %v833 = vpop.f32.mrb[0].mxu0
      %834 = vdwg.mxu0
      %v835 = vadd.f32 %v780, %v830
      %v836 = vld [vmem:[%s326] sm:$0x1]
      %v838 = vlaneseq
      %v839 = vshrl.u32 %v838, 7
      %v840 = vsub.s32 0, %v839
      %v841 = vrot.slane %v836, %v840
      %v843 = vmul.f32 %v835, %v841
      %v844 = vpack.c.bf16 %v843, %v843
      %845 = vst [vmem:[%s334] sm:$0xf] %v844
      %846 = vadd.xlane.f32.xlu0 %v843
      %v847 = vpop.xlane.xlu0 %846
      %v848 = vmul.f32 %v843, %v843
      %849 = vadd.xlane.f32.xlu0 %v848
      %v850 = vpop.xlane.xlu0 %849
      %v851 = vlaneseq
      %v852 = vand.u32 %v851, 127
      %vm853 = vcmp.eq.s32.totalorder %v852, 0
      %vm854 = vcmp.eq.s32.totalorder %v852, 1
      %v855 = vsel %vm854, %v850, 0.0
      %v856 = vsel %vm853, %v847, %v855
      %857 = vst [vmem:[%s340] sm:$0xff] %v856
      %p858 = scmp.lt.s32.totalorder %s21, 1
      %s859 = scalar_select %p858, %s21, 1
      %p860 = scmp.lt.s32.totalorder %s22, 2
      %s861 = scalar_select %p860, %s22, 2
      %s862 = smul.addr %s859, 3
      %s863 = sadd.s32 %s861, %s862
      %s864 = smul.addr %s863, 4
      %s865 = scalar_lea.vmem %s4, %s864
      %s866 = smul.u32 %s21, 3
      %s867 = sadd.s32 %s866, %s22
      %p868 = scmp.lt.s32.totalorder %s867, 5
      %s869 = scalar_select %p868, %s867, 5
      %s870 = smul.addr %s869, 8
      %s871 = scalar_lea.vmem %s5, %s870
      // Predicated region
      $region37: #{conv_bn_silu.2} parent=35 // pred_check
        %p872 = pneg %p158
      $region38: #{conv_bn_silu.2} parent=35 // pred_check_branch
        %874 = sbr.rel (%p872) target = $region40
      $region39: #{conv_bn_silu.2} parent=35 // pred_region
        _
      $region40: #{conv_bn_silu.2} parent=35 // pred_fallthru
        _
      // Predicated region
      $region41: #{conv_bn_silu.2} parent=35 // pred_check
        %p875 = pneg %p188
      $region42: #{conv_bn_silu.2} parent=35 // pred_check_branch
        %877 = sbr.rel (%p875) target = $region44
      $region43: #{conv_bn_silu.2} parent=35 // pred_region
        %s878 = smul.u32 %s21, 3
        %s879 = sadd.s32 %s878, %s22
      $region44: #{conv_bn_silu.2} parent=35 // pred_fallthru
        _
    $region36: #{conv_bn_silu.2} parent=5 // pred_fallthru
      _
    %p880 = scmp.le.s32.totalorder 2, %s12
    // Predicated region
    $region45: #{conv_bn_silu.2} parent=5 // pred_check
      %p881 = pneg %p880
    $region46: #{conv_bn_silu.2} parent=5 // pred_check_branch
      %883 = sbr.rel (%p881) target = $region48
    $region47: #{conv_bn_silu.2} parent=5 // pred_region
      %s884 = ssub.s32 %s12, 2
      // Predicated region
      $region49: #{conv_bn_silu.2} parent=47 // pred_check
        %p885 = pneg %p164
      $region50: #{conv_bn_silu.2} parent=47 // pred_check_branch
        %887 = sbr.rel (%p885) target = $region52
      $region51: #{conv_bn_silu.2} parent=47 // pred_region
        %p888 = scmp.lt.s32.totalorder %s23, 1
        %s889 = scalar_select %p888, %s23, 1
        %p890 = scmp.lt.s32.totalorder %s24, 2
        %s891 = scalar_select %p890, %s24, 2
        %s892 = smul.addr %s889, 3
        %s893 = sadd.s32 %s891, %s892
        %s894 = smul.addr %s893, 4
        %s895 = scalar_lea.vmem %s4, %s894
      $region52: #{conv_bn_silu.2} parent=47 // pred_fallthru
        _
      // Predicated region
      $region53: #{conv_bn_silu.2} parent=47 // pred_check
        %p896 = pneg %p194
      $region54: #{conv_bn_silu.2} parent=47 // pred_check_branch
        %898 = sbr.rel (%p896) target = $region56
      $region55: #{conv_bn_silu.2} parent=47 // pred_region
        %s899 = smul.u32 %s23, 3
        %s900 = sadd.s32 %s899, %s24
        %p901 = scmp.lt.s32.totalorder %s900, 5
        %s902 = scalar_select %p901, %s900, 5
        %s903 = smul.addr %s902, 8
        %s904 = scalar_lea.vmem %s5, %s903
      $region56: #{conv_bn_silu.2} parent=47 // pred_fallthru
        _
    $region48: #{conv_bn_silu.2} parent=5 // pred_fallthru
      _
  $region6: #{conv_bn_silu.2} parent=0 // loop_footer
    %s16 = sadd.s32 1, %s12
  $region7: #{conv_bn_silu.2} parent=0 // loop_footer_branch
    %11 = sbr.rel target = $region3
  $region8: #{conv_bn_silu.2} parent=0 // loop_exit
    _

</llo_original>
